<compile_context>
chip_gen: v6e
topology: v6e:2x2x1
jax: 0.10.0
libtpu: 0.0.40
codegen_flags: <defaults>
</compile_context>

<pallas_src>
import math
import numpy as np
import jax
import jax.numpy as jnp
from jax.experimental import pallas as pl
from jax.experimental.pallas import tpu as pltpu


# ----------------------------- config (matches the module's small setup) ------------------
INPUT_CHANNELS = 4
ENCODER_LAYERS = [8, 16]
LATENT_DIM = 8
DECODER_LAYERS = [16, 8]
KERNEL_SIZE = 3
STRIDE = 2
PADDING = 1
OUTPUT_PADDING = 1
INPUT_LENGTH = 16
BATCH = 2


# Derived sizes ------------------------------------------------------------------------
def _conv_out(L):   # Conv1d output length
    return (L + 2 * PADDING - (KERNEL_SIZE - 1) - 1) // STRIDE + 1


def _convT_out(L):  # ConvTranspose1d output length
    return (L - 1) * STRIDE - 2 * PADDING + KERNEL_SIZE + OUTPUT_PADDING


L1 = _conv_out(INPUT_LENGTH)            # 8
L2 = _conv_out(L1)                      # 4  (== final_feature_size)
LD1 = _convT_out(L2)                    # 8
LD2 = _convT_out(LD1)                   # 16
assert LD2 == INPUT_LENGTH

D_X = INPUT_CHANNELS * INPUT_LENGTH     # 64   flattened input / recon width
D_E1 = ENCODER_LAYERS[0] * L1           # 64
D_E2 = ENCODER_LAYERS[1] * L2           # 64   encoder flat size
D_MLV = 2 * LATENT_DIM                  # 16   concatenated mean|logvar
D_D1 = DECODER_LAYERS[1] * LD1          # 64   decoder hidden (after folded Linear+ConvT)
D_REC = INPUT_CHANNELS * LD2            # 64
D_MLV_EXT = D_MLV + D_D1                # 80   [mean | logvar | mean @ Wdec_fold]

IN_WIDTH = 128                          # [x(64) | eps(8) | zero pad(56)]
OUT_WIDTH = 128                         # [recon(64) | mean(8) | logvar(8) | zero pad(48)]
assert D_X + LATENT_DIM <= IN_WIDTH
assert D_REC + D_MLV <= OUT_WIDTH
assert D_MLV_EXT <= 128


def _round8(n):
    return ((n + 7) // 8) * 8


def _round16(n):  # bf16 packs 2 rows per sublane -> keep slab offsets on 16-row boundaries
    return ((n + 15) // 16) * 16


# Packed bf16 weight-slab row layout (all offsets multiples of 16)
R_W1 = 0                                # (D_X,   D_E1)      enc conv1 (Toeplitz)
R_W2 = R_W1 + _round16(D_X)             # 64: (D_E1, D_E2)   enc conv2 (Toeplitz)
R_WMLV = R_W2 + _round16(D_E1)          # 128: (D_E2, D_MLV_EXT) merged [Wmu|Wlv|Wmu@Wdec_fold]
R_WDEC = R_WMLV + _round16(D_E2)        # 192: (LATENT, D_D1)    Wdec_fold = Wdec @ WconvT1
R_WD2 = R_WDEC + _round16(LATENT_DIM)   # 208: (D_D1, D_REC)     final ConvTranspose (Toeplitz)
SLAB_ROWS = R_WD2 + _round16(D_D1)      # 272
SLAB_COLS = 128

# f32 bias slab: a single (8, 128) block, one bias per row
B_ROWS = 8
BI_1, BI_2, BI_MLV, BI_D2 = 0, 1, 2, 3


# ----------------------------- dense (Toeplitz) conv matrices (setup glue) ----------------
def conv1d_dense(w, b, L_in):
    """w: (Cout, Cin, K) torch Conv1d layout -> dense (Cin*L_in, Cout*L_out), bias (1, Cout*L_out)."""
    Cout, Cin, K = w.shape
    L_out = _conv_out(L_in)
    M = np.zeros((Cin * L_in, Cout * L_out), dtype=np.float32)
    for cout in range(Cout):
        for t in range(L_out):
            for cin in range(Cin):
                for k in range(K):
                    i = t * STRIDE + k - PADDING
                    if 0 <= i < L_in:
                        M[cin * L_in + i, cout * L_out + t] = w[cout, cin, k]
    bias = np.repeat(np.asarray(b, np.float32), L_out)[None, :]
    return M, bias, L_out


def convT1d_dense(w, b, L_in):
    """w: (Cin, Cout, K) torch ConvTranspose1d layout -> dense (Cin*L_in, Cout*L_out), bias."""
    Cin, Cout, K = w.shape
    L_out = _convT_out(L_in)
    M = np.zeros((Cin * L_in, Cout * L_out), dtype=np.float32)
    for cin in range(Cin):
        for i in range(L_in):
            for cout in range(Cout):
                for k in range(K):
                    t = i * STRIDE - PADDING + k
                    if 0 <= t < L_out:
                        M[cin * L_in + i, cout * L_out + t] += w[cin, cout, k]
    bias = np.repeat(np.asarray(b, np.float32), L_out)[None, :]
    return M, bias, L_out


# ----------------------------- parameter init + slab packing ------------------------------
def init_params(key):
    ks = jax.random.split(key, 14)

    def uni(k, shape, fan_in):
        bound = 1.0 / math.sqrt(fan_in)
        return np.asarray(jax.random.uniform(k, shape, jnp.float32, -bound, bound))

    # encoder Conv1d(4 -> 8), Conv1d(8 -> 16)
    w1 = uni(ks[0], (ENCODER_LAYERS[0], INPUT_CHANNELS, KERNEL_SIZE), INPUT_CHANNELS * KERNEL_SIZE)
    b1 = uni(ks[1], (ENCODER_LAYERS[0],), INPUT_CHANNELS * KERNEL_SIZE)
    w1d, b1d, l1 = conv1d_dense(w1, b1, INPUT_LENGTH)
    w2 = uni(ks[2], (ENCODER_LAYERS[1], ENCODER_LAYERS[0], KERNEL_SIZE), ENCODER_LAYERS[0] * KERNEL_SIZE)
    b2 = uni(ks[3], (ENCODER_LAYERS[1],), ENCODER_LAYERS[0] * KERNEL_SIZE)
    w2d, b2d, l2 = conv1d_dense(w2, b2, l1)
    assert l2 == L2

    # encoder Linear(64 -> 2*latent): mean | logvar halves (== torch.chunk)
    wmu = uni(ks[4], (D_E2, LATENT_DIM), D_E2)
    bmu = uni(ks[5], (1, LATENT_DIM), D_E2)
    wlv = uni(ks[6], (D_E2, LATENT_DIM), D_E2)
    blv = uni(ks[7], (1, LATENT_DIM), D_E2)

    # decoder Linear(latent -> 64) followed (with NO activation in between) by
    # ConvTranspose1d(16 -> 8): fold into one dense matrix.
    wdec = uni(ks[8], (LATENT_DIM, DECODER_LAYERS[0] * L2), LATENT_DIM)
    bdec = uni(ks[9], (1, DECODER_LAYERS[0] * L2), LATENT_DIM)
    wd1 = uni(ks[10], (DECODER_LAYERS[0], DECODER_LAYERS[1], KERNEL_SIZE), DECODER_LAYERS[0] * KERNEL_SIZE)
    bd1 = uni(ks[11], (DECODER_LAYERS[1],), DECODER_LAYERS[0] * KERNEL_SIZE)
    wd1d, bd1d, ld1 = convT1d_dense(wd1, bd1, L2)
    assert ld1 == LD1
    wdecd1 = wdec @ wd1d                       # (LATENT, D_D1)
    bdecd1 = bdec @ wd1d + bd1d                # (1, D_D1)

    # decoder final ConvTranspose1d(8 -> 4), no activation
    wd2 = uni(ks[12], (DECODER_LAYERS[1], INPUT_CHANNELS, KERNEL_SIZE), DECODER_LAYERS[1] * KERNEL_SIZE)
    bd2 = uni(ks[13], (INPUT_CHANNELS,), DECODER_LAYERS[1] * KERNEL_SIZE)
    wd2d, bd2d, ld2 = convT1d_dense(wd2, bd2, LD1)
    assert ld2 == INPUT_LENGTH

    # Pre-fold the mean path of the decoder into the merged encoder projection:
    # one K=64 matmul on h yields [mean | logvar | mean @ Wdec_fold (+ full bias)].
    wmlv_ext = np.concatenate([wmu, wlv, wmu @ wdecd1], axis=1)                 # (64, 80)
    bmlv_ext = np.concatenate([bmu, blv, bmu @ wdecd1 + bdecd1], axis=1)        # (1, 80)

    # bf16 weight slab (single resident DMA), f32 bias slab (tiny, resident).
    w_slab = np.zeros((SLAB_ROWS, SLAB_COLS), np.float32)
    w_slab[R_W1:R_W1 + D_X, :D_E1] = w1d
    w_slab[R_W2:R_W2 + D_E1, :D_E2] = w2d
    w_slab[R_WMLV:R_WMLV + D_E2, :D_MLV_EXT] = wmlv_ext
    w_slab[R_WDEC:R_WDEC + LATENT_DIM, :D_D1] = wdecd1
    w_slab[R_WD2:R_WD2 + D_D1, :D_REC] = wd2d

    b_slab = np.zeros((B_ROWS, SLAB_COLS), np.float32)
    b_slab[BI_1, :D_E1] = b1d[0]
    b_slab[BI_2, :D_E2] = b2d[0]
    b_slab[BI_MLV, :D_MLV_EXT] = bmlv_ext[0]
    b_slab[BI_D2, :D_REC] = bd2d[0]

    return jnp.asarray(w_slab, jnp.bfloat16), jnp.asarray(b_slab, jnp.float32)


# ----------------------------- Pallas kernel ----------------------------------------------
def vae_kernel(xe_ref, w_ref, b_ref, out_ref):
    f32 = jnp.float32
    bf16 = jnp.bfloat16

    xe = xe_ref[...]                                    # (T, 128) f32: [x | eps | pad]
    T = xe.shape[0]
    x = xe[:, 0:D_X]
    eps = xe[:, D_X:D_X + LATENT_DIM]

    # encoder: Conv1d + SiLU, Conv1d + SiLU (bf16 MXU operands, f32 accumulation)
    h = jnp.dot(x.astype(bf16), w_ref[R_W1:R_W1 + D_X, 0:D_E1],
                preferred_element_type=f32) + b_ref[BI_1:BI_1 + 1, 0:D_E1]
    h = jax.nn.silu(h)
    h = jnp.dot(h.astype(bf16), w_ref[R_W2:R_W2 + D_E1, 0:D_E2],
                preferred_element_type=f32) + b_ref[BI_2:BI_2 + 1, 0:D_E2]
    h = jax.nn.silu(h)

    # merged projection: [mean | logvar | mean@Wdec_fold (+bias)] in one K=64 matmul
    mlv_ext = jnp.dot(h.astype(bf16), w_ref[R_WMLV:R_WMLV + D_E2, 0:D_MLV_EXT],
                      preferred_element_type=f32) + b_ref[BI_MLV:BI_MLV + 1, 0:D_MLV_EXT]
    mlv = mlv_ext[:, 0:D_MLV]                           # [mean | logvar], contiguous
    logvar = mlv_ext[:, LATENT_DIM:D_MLV]
    mean_dec = mlv_ext[:, D_MLV:D_MLV_EXT]              # mean @ Wdec_fold + full decoder bias

    # reparameterize + (eps * std) path of the folded decoder layer (only K=8 matmul left
    # on the serial chain; the mean path was pre-folded above)
    e = eps * jnp.exp(0.5 * logvar)                     # f32 elementwise (EUP exp)
    g = mean_dec + jnp.dot(e.astype(bf16), w_ref[R_WDEC:R_WDEC + LATENT_DIM, 0:D_D1],
                           preferred_element_type=f32)
    g = jax.nn.silu(g)

    # final ConvTranspose1d (dense)
    recon = jnp.dot(g.astype(bf16), w_ref[R_WD2:R_WD2 + D_D1, 0:D_REC],
                    preferred_element_type=f32) + b_ref[BI_D2:BI_D2 + 1, 0:D_REC]

    # single full-width (lane-dense) store: [recon | mean | logvar | zero pad]
    out_ref[...] = jnp.concatenate(
        [recon, mlv, jnp.zeros((T, OUT_WIDTH - D_REC - D_MLV), f32)], axis=-1)


# ----------------------------- wrapper ------------------------------------------------------
def vae_forward(x, w_slab, b_slab, eps, batch_tile=256):
    """x: (N, C, L) float32 (NCL, same as torch Conv1d). Returns (recon (N,C,L), mean, logvar)."""
    N, C, L = x.shape
    assert C * L == D_X
    x_flat = x.reshape(N, D_X).astype(jnp.float32)
    eps = eps.astype(jnp.float32)

    # Right-size the batch tile: tiny batches pad only to 8 rows; larger batches keep
    # >= 2 grid steps (so v7x can shard the batch over both TCs) with tile <= batch_tile
    # (256 fills the MXU M dimension on v6e/v7x; 128 already fills it on v5e).
    if N <= 8:
        tile = 8
    else:
        tile = min(batch_tile, _round8((N + 1) // 2))
    n_pad = -(-N // tile) * tile

    # lane-dense packed input slab: [x(64) | eps(8) | zero pad(56)]
    xe = jnp.concatenate(
        [x_flat, eps, jnp.zeros((N, IN_WIDTH - D_X - LATENT_DIM), jnp.float32)], axis=1)
    if n_pad != N:
        xe = jnp.pad(xe, ((0, n_pad - N), (0, 0)))

    out = pl.pallas_call(
        vae_kernel,
        out_shape=jax.ShapeDtypeStruct((n_pad, OUT_WIDTH), jnp.float32),
        grid=(n_pad // tile,),
        in_specs=[
            pl.BlockSpec((tile, IN_WIDTH), lambda i: (i, 0)),           # streamed input
            pl.BlockSpec((SLAB_ROWS, SLAB_COLS), lambda i: (0, 0)),     # bf16 weights, resident
            pl.BlockSpec((B_ROWS, SLAB_COLS), lambda i: (0, 0)),        # f32 biases, resident
        ],
        out_specs=pl.BlockSpec((tile, OUT_WIDTH), lambda i: (i, 0)),
        compiler_params=pltpu.CompilerParams(
            dimension_semantics=("parallel",)),
    )(xe, w_slab, b_slab)

    recon = out[:N, 0:D_REC].reshape(N, C, L)
    mean = out[:N, D_REC:D_REC + LATENT_DIM]
    logvar = out[:N, D_REC + LATENT_DIM:D_REC + D_MLV]
    return recon, mean, logvar


# ----------------------------- pure-JAX reference (same packed params) ---------------------
def vae_ref(x, w_slab, b_slab, eps):
    N, C, L = x.shape
    xf = x.reshape(N, D_X).astype(jnp.float32)
    w = w_slab                      # bf16
    b = b_slab.astype(jnp.float32)  # f32
    bf16 = jnp.bfloat16
    f32 = jnp.float32

    def mm(a, wmat):
        return jnp.dot(a.astype(bf16), wmat, preferred_element_type=f32)

    h = jax.nn.silu(mm(xf, w[R_W1:R_W1 + D_X, :D_E1]) + b[BI_1, :D_E1])
    h = jax.nn.silu(mm(h, w[R_W2:R_W2 + D_E1, :D_E2]) + b[BI_2, :D_E2])
    mlv_ext = mm(h, w[R_WMLV:R_WMLV + D_E2, :D_MLV_EXT]) + b[BI_MLV, :D_MLV_EXT]
    mean = mlv_ext[:, :LATENT_DIM]
    logvar = mlv_ext[:, LATENT_DIM:D_MLV]
    mean_dec = mlv_ext[:, D_MLV:D_MLV_EXT]
    e = eps.astype(jnp.float32) * jnp.exp(0.5 * logvar)
    g = jax.nn.silu(mean_dec + mm(e, w[R_WDEC:R_WDEC + LATENT_DIM, :D_D1]))
    recon = mm(g, w[R_WD2:R_WD2 + D_D1, :D_REC]) + b[BI_D2, :D_REC]
    return recon.reshape(N, C, L), mean, logvar


# ----------------------------- main --------------------------------------------------------
if __name__ == "__main__":
    key = jax.random.PRNGKey(0)
    k_param, k_x, k_eps = jax.random.split(key, 3)

    w_slab, b_slab = init_params(k_param)
    x = jax.random.normal(k_x, (BATCH, INPUT_CHANNELS, INPUT_LENGTH), jnp.float32)
    # torch.randn_like(std) -> deterministic eps generated outside the kernel.
    eps = jax.random.normal(k_eps, (BATCH, LATENT_DIM), jnp.float32)

    recon, mean, logvar = jax.jit(vae_forward)(x, w_slab, b_slab, eps)
    jax.block_until_ready((recon, mean, logvar))

    assert recon.shape == (BATCH, INPUT_CHANNELS, INPUT_LENGTH)
    assert mean.shape == (BATCH, LATENT_DIM)
    assert logvar.shape == (BATCH, LATENT_DIM)

    r_ref, m_ref, lv_ref = vae_ref(x, w_slab, b_slab, eps)
    np.testing.assert_allclose(np.asarray(recon), np.asarray(r_ref), rtol=2e-2, atol=2e-2)
    np.testing.assert_allclose(np.asarray(mean), np.asarray(m_ref), rtol=2e-2, atol=2e-2)
    np.testing.assert_allclose(np.asarray(logvar), np.asarray(lv_ref), rtol=2e-2, atol=2e-2)
    assert bool(jnp.all(jnp.isfinite(recon))) and bool(jnp.all(jnp.isfinite(mean)))

    print("KERNEL_OK")
</pallas_src>

<mosaic_0001>
module attributes {stable_mosaic.version = 11 : i64} {
  func.func @vae_kernel(%arg0: i32, %arg1: memref<8x128xf32, #tpu.memory_space<vmem>>, %arg2: memref<272x128xbf16, #tpu.memory_space<vmem>>, %arg3: memref<8x128xf32, #tpu.memory_space<vmem>>, %arg4: memref<8x128xf32, #tpu.memory_space<vmem>>) attributes {dimension_semantics = [#tpu.dimension_semantics<parallel>], iteration_bounds = array<i64: 1>, scalar_prefetch = 0 : i64, scratch_operands = 0 : i64, tpu.core_type = #tpu.core_type<tc>, window_params = [{transform_indices = @transform_0, window_bounds = array<i64: 8, 128>}, {pipeline_mode = #tpu.pipeline_mode<synchronous>, transform_indices = @transform_1, window_bounds = array<i64: 272, 128>}, {pipeline_mode = #tpu.pipeline_mode<synchronous>, transform_indices = @transform_2, window_bounds = array<i64: 8, 128>}, {transform_indices = @transform_3, window_bounds = array<i64: 8, 128>}]} {
    %c0 = arith.constant 0 : index
    %c0_0 = arith.constant 0 : index
    %0 = vector.load %arg1[%c0, %c0_0] : memref<8x128xf32, #tpu.memory_space<vmem>>, vector<8x128xf32>
    %1 = vector.extract_strided_slice %0 {offsets = [0, 0], sizes = [8, 64], strides = [1, 1]} : vector<8x128xf32> to vector<8x64xf32>
    %2 = vector.extract_strided_slice %0 {offsets = [0, 64], sizes = [8, 8], strides = [1, 1]} : vector<8x128xf32> to vector<8x8xf32>
    %3 = arith.truncf %1 : vector<8x64xf32> to vector<8x64xbf16>
    %c0_1 = arith.constant 0 : index
    %c0_2 = arith.constant 0 : index
    %4 = vector.load %arg2[%c0_1, %c0_2] : memref<272x128xbf16, #tpu.memory_space<vmem>>, vector<64x64xbf16>
    %cst = arith.constant dense<0.000000e+00> : vector<8x64xf32>
    %5 = tpu.matmul %3, %4, %cst {dimension_numbers = #tpu.dot_dimension_numbers<[1], [0], [0], [1], [0, 0, 1, 1], [], []>} : vector<8x64xbf16>, vector<64x64xbf16>, vector<8x64xf32> -> vector<8x64xf32>
    %c0_3 = arith.constant 0 : index
    %c0_4 = arith.constant 0 : index
    %6 = vector.load %arg3[%c0_3, %c0_4] : memref<8x128xf32, #tpu.memory_space<vmem>>, vector<1x64xf32>
    %7 = vector.broadcast %6 : vector<1x64xf32> to vector<8x64xf32>
    %8 = arith.addf %5, %7 : vector<8x64xf32>
    %9 = arith.negf %8 : vector<8x64xf32>
    %10 = math.exp %9 : vector<8x64xf32>
    %cst_5 = arith.constant 1.000000e+00 : f32
    %11 = vector.broadcast %cst_5 : f32 to vector<8x64xf32>
    %12 = arith.addf %11, %10 : vector<8x64xf32>
    %13 = arith.divf %11, %12 : vector<8x64xf32>
    %14 = arith.mulf %8, %13 : vector<8x64xf32>
    %15 = arith.truncf %14 : vector<8x64xf32> to vector<8x64xbf16>
    %c64 = arith.constant 64 : index
    %c0_6 = arith.constant 0 : index
    %16 = vector.load %arg2[%c64, %c0_6] : memref<272x128xbf16, #tpu.memory_space<vmem>>, vector<64x64xbf16>
    %cst_7 = arith.constant dense<0.000000e+00> : vector<8x64xf32>
    %17 = tpu.matmul %15, %16, %cst_7 {dimension_numbers = #tpu.dot_dimension_numbers<[1], [0], [0], [1], [0, 0, 1, 1], [], []>} : vector<8x64xbf16>, vector<64x64xbf16>, vector<8x64xf32> -> vector<8x64xf32>
    %c1 = arith.constant 1 : index
    %c0_8 = arith.constant 0 : index
    %18 = vector.load %arg3[%c1, %c0_8] : memref<8x128xf32, #tpu.memory_space<vmem>>, vector<1x64xf32>
    %19 = vector.broadcast %18 : vector<1x64xf32> to vector<8x64xf32>
    %20 = arith.addf %17, %19 : vector<8x64xf32>
    %21 = arith.negf %20 : vector<8x64xf32>
    %22 = math.exp %21 : vector<8x64xf32>
    %cst_9 = arith.constant 1.000000e+00 : f32
    %23 = vector.broadcast %cst_9 : f32 to vector<8x64xf32>
    %24 = arith.addf %23, %22 : vector<8x64xf32>
    %25 = arith.divf %23, %24 : vector<8x64xf32>
    %26 = arith.mulf %20, %25 : vector<8x64xf32>
    %27 = arith.truncf %26 : vector<8x64xf32> to vector<8x64xbf16>
    %c128 = arith.constant 128 : index
    %c0_10 = arith.constant 0 : index
    %28 = vector.load %arg2[%c128, %c0_10] : memref<272x128xbf16, #tpu.memory_space<vmem>>, vector<64x80xbf16>
    %cst_11 = arith.constant dense<0.000000e+00> : vector<8x80xf32>
    %29 = tpu.matmul %27, %28, %cst_11 {dimension_numbers = #tpu.dot_dimension_numbers<[1], [0], [0], [1], [0, 0, 1, 1], [], []>} : vector<8x64xbf16>, vector<64x80xbf16>, vector<8x80xf32> -> vector<8x80xf32>
    %c2 = arith.constant 2 : index
    %c0_12 = arith.constant 0 : index
    %30 = vector.load %arg3[%c2, %c0_12] : memref<8x128xf32, #tpu.memory_space<vmem>>, vector<1x80xf32>
    %31 = vector.broadcast %30 : vector<1x80xf32> to vector<8x80xf32>
    %32 = arith.addf %29, %31 : vector<8x80xf32>
    %33 = vector.extract_strided_slice %32 {offsets = [0, 0], sizes = [8, 16], strides = [1, 1]} : vector<8x80xf32> to vector<8x16xf32>
    %34 = vector.extract_strided_slice %32 {offsets = [0, 8], sizes = [8, 8], strides = [1, 1]} : vector<8x80xf32> to vector<8x8xf32>
    %35 = vector.extract_strided_slice %32 {offsets = [0, 16], sizes = [8, 64], strides = [1, 1]} : vector<8x80xf32> to vector<8x64xf32>
    %cst_13 = arith.constant 5.000000e-01 : f32
    %36 = vector.broadcast %cst_13 : f32 to vector<8x8xf32>
    %37 = arith.mulf %36, %34 : vector<8x8xf32>
    %38 = math.exp %37 : vector<8x8xf32>
    %39 = arith.mulf %2, %38 : vector<8x8xf32>
    %40 = arith.truncf %39 : vector<8x8xf32> to vector<8x8xbf16>
    %c192 = arith.constant 192 : index
    %c0_14 = arith.constant 0 : index
    %41 = vector.load %arg2[%c192, %c0_14] : memref<272x128xbf16, #tpu.memory_space<vmem>>, vector<8x64xbf16>
    %cst_15 = arith.constant dense<0.000000e+00> : vector<8x64xf32>
    %42 = tpu.matmul %40, %41, %cst_15 {dimension_numbers = #tpu.dot_dimension_numbers<[1], [0], [0], [1], [0, 0, 1, 1], [], []>} : vector<8x8xbf16>, vector<8x64xbf16>, vector<8x64xf32> -> vector<8x64xf32>
    %43 = arith.addf %35, %42 : vector<8x64xf32>
    %44 = arith.negf %43 : vector<8x64xf32>
    %45 = math.exp %44 : vector<8x64xf32>
    %cst_16 = arith.constant 1.000000e+00 : f32
    %46 = vector.broadcast %cst_16 : f32 to vector<8x64xf32>
    %47 = arith.addf %46, %45 : vector<8x64xf32>
    %48 = arith.divf %46, %47 : vector<8x64xf32>
    %49 = arith.mulf %43, %48 : vector<8x64xf32>
    %50 = arith.truncf %49 : vector<8x64xf32> to vector<8x64xbf16>
    %c208 = arith.constant 208 : index
    %c0_17 = arith.constant 0 : index
    %51 = vector.load %arg2[%c208, %c0_17] : memref<272x128xbf16, #tpu.memory_space<vmem>>, vector<64x64xbf16>
    %cst_18 = arith.constant dense<0.000000e+00> : vector<8x64xf32>
    %52 = tpu.matmul %50, %51, %cst_18 {dimension_numbers = #tpu.dot_dimension_numbers<[1], [0], [0], [1], [0, 0, 1, 1], [], []>} : vector<8x64xbf16>, vector<64x64xbf16>, vector<8x64xf32> -> vector<8x64xf32>
    %c3 = arith.constant 3 : index
    %c0_19 = arith.constant 0 : index
    %53 = vector.load %arg3[%c3, %c0_19] : memref<8x128xf32, #tpu.memory_space<vmem>>, vector<1x64xf32>
    %54 = vector.broadcast %53 : vector<1x64xf32> to vector<8x64xf32>
    %55 = arith.addf %52, %54 : vector<8x64xf32>
    %cst_20 = arith.constant 0.000000e+00 : f32
    %56 = vector.broadcast %cst_20 : f32 to vector<8x48xf32>
    %57 = tpu.concatenate %55, %33, %56 in 1 : vector<8x64xf32>, vector<8x16xf32>, vector<8x48xf32> -> vector<8x128xf32>
    %c0_21 = arith.constant 0 : index
    %c0_22 = arith.constant 0 : index
    %58 = vector.load %arg4[%c0_21, %c0_22] : memref<8x128xf32, #tpu.memory_space<vmem>>, vector<8x128xf32>
    tpu.vector_store %arg4[%c0_21, %c0_22], %57 {strides = array<i32>} : memref<8x128xf32, #tpu.memory_space<vmem>>, vector<8x128xf32>,
    return
  }
  func.func @transform_0(%arg0: i32) -> (i32, i32) {
    %c0_i32 = arith.constant 0 : i32
    %c0_i32_0 = arith.constant 0 : i32
    return %arg0, %c0_i32 : i32, i32
  }
  func.func @transform_1(%arg0: i32) -> (i32, i32) {
    %c0_i32 = arith.constant 0 : i32
    %c0_i32_0 = arith.constant 0 : i32
    %c0_i32_1 = arith.constant 0 : i32
    return %c0_i32, %c0_i32_0 : i32, i32
  }
  func.func @transform_2(%arg0: i32) -> (i32, i32) {
    %c0_i32 = arith.constant 0 : i32
    %c0_i32_0 = arith.constant 0 : i32
    %c0_i32_1 = arith.constant 0 : i32
    return %c0_i32, %c0_i32_0 : i32, i32
  }
  func.func @transform_3(%arg0: i32) -> (i32, i32) {
    %c0_i32 = arith.constant 0 : i32
    %c0_i32_0 = arith.constant 0 : i32
    return %arg0, %c0_i32 : i32, i32
  }
}

</mosaic_0001>

<llo_original>
// kernel: vae_forward.1
$region0: #{vae_forward.1}
  #allocation0 [shape = 'u32[]', space=smem, size = 0x4, offset = 0x4, fixed_abs, tag = 'smem constant byte address 0x4 - core index']
  #allocation1 [shape = 'u32[144,128]{1,0:T(1,128)}', space=vmem, size = 0x12000, scoped, tag = 'internal scratch']
  %s0 = inlined_call_operand.vmem [shape: f32[8,128], index: 0, kind: input, shape index: {}]
  %s1 = inlined_call_operand.hbm [shape: bf16[272,128], index: 1, kind: input, shape index: {}]
  %s2 = inlined_call_operand.vmem [shape: f32[8,128], index: 2, kind: input, shape index: {}]
  %s3 = inlined_call_operand.vmem [shape: f32[8,128], index: 3, kind: output, shape index: {}]
  %s4 = sld [smem:[#allocation0]]
  $region26: #{vae_forward.1} parent=0
    _
  %s6 = ssub.s32 1, %s4
  %s7 = scalar_select 0, %s6, %s4
  $region1: #{vae_forward.1} parent=0
    #allocation2 [shape = 'u8[69632]{0}', space=vmem, size = 0x11000, scoped, tag = 'input window, operand 1, single buffered']
    #allocation3 [shape = 's32[1]{0}', space=sflag, size = 0x4, scoped, tag = 'scoped memory for vae_forward.1']
    %8 = vsyncpa [#allocation3], 0
    // Predicated region
    $region2: #{vae_forward.1} parent=1 // pred_check
      _
    $region3: #{vae_forward.1} parent=1 // pred_check_branch
      %10 = sbr.rel (0) target = $region5
    $region4: #{vae_forward.1} parent=1 // pred_region
      _
    $region5: #{vae_forward.1} parent=1 // pred_fallthru
      _
    // Predicated region
    $region6: #{vae_forward.1} parent=1 // pred_check
      _
    $region7: #{vae_forward.1} parent=1 // pred_check_branch
      %12 = sbr.rel (0) target = $region9
    $region8: #{vae_forward.1} parent=1 // pred_region
      %s14 = ssub.s32 2176, 2176
      %15 = vsyncadd [#allocation3], %s14
      %s16 = sshll.u32 [#allocation2], 4
      %s17 = int_to_ptr.vmem [resolvable:$true] %s16
      %22 = dma.hbm_to_vmem [thread:$0]  %s1, 2176, %s17, [#allocation3], 64, 64, 4
    $region9: #{vae_forward.1} parent=1 // pred_fallthru
      _
    // Predicated region
    $region10: #{vae_forward.1} parent=1 // pred_check
      _
    $region11: #{vae_forward.1} parent=1 // pred_check_branch
      %24 = sbr.rel (0) target = $region13
    $region12: #{vae_forward.1} parent=1 // pred_region
      _
    $region13: #{vae_forward.1} parent=1 // pred_fallthru
      _
    // Predicated region
    $region14: #{vae_forward.1} parent=1 // pred_check
      _
    $region15: #{vae_forward.1} parent=1 // pred_check_branch
      %26 = sbr.rel (0) target = $region17
    $region16: #{vae_forward.1} parent=1 // pred_region
      %27 = dma.done [#allocation3], 2176
    $region17: #{vae_forward.1} parent=1 // pred_fallthru
      _
    %v29 = vld [vmem:[%s0] sm:$0xff]
    %v30 = vpack.c.bf16 %v29, %v29
    %v31 = vld [vmem:[#allocation2] sm:$0xf]
    %v32 = vld [vmem:[#allocation2 + $0x4] sm:$0xf]
    %v33 = vld [vmem:[#allocation2 + $0x8] sm:$0xf]
    %v34 = vld [vmem:[#allocation2 + $0xc] sm:$0xf]
    %v35 = vld [vmem:[#allocation2 + $0x10] sm:$0xf]
    %v36 = vld [vmem:[#allocation2 + $0x14] sm:$0xf]
    %v37 = vld [vmem:[#allocation2 + $0x18] sm:$0xf]
    %v38 = vld [vmem:[#allocation2 + $0x1c] sm:$0xf]
    %v39 = vld [vmem:[%s2] sm:$0x1]
    %v40 = vlaneseq
    %v41 = vshrl.u32 %v40, 7
    %v42 = vsub.s32 0, %v41
    %v43 = vrot.slane %v39, %v42
    %v52 = vunpack.c.l.b16 %v31
    %v53 = vunpack.c.l.b16 %v32
    %v54 = vunpack.c.l.b16 %v33
    %v55 = vunpack.c.l.b16 %v34
    %v56 = vunpack.c.l.b16 %v35
    %v57 = vunpack.c.l.b16 %v36
    %v58 = vunpack.c.l.b16 %v37
    %v59 = vunpack.c.l.b16 %v38
    %v60 = vpack.c.b16 %v53, %v52
    %v61 = vpack.c.b16 %v55, %v54
    %v62 = vpack.c.b16 %v57, %v56
    %v63 = vpack.c.b16 %v59, %v58
    %vm68 = vcmask 523264
    %v70 = vsel %vm68, %v30, 0
    %72 = vmatprep.subr.bf16.mxu0 0
    %73 = vmatpush1.bf16.msra.mxu0 0
    %74 = vmatprep.subr.bf16.mxu0 0
    %75 = vmatpush1.bf16.msra.mxu0 0
    %76 = vmatprep.subr.bf16.mxu0 0
    %77 = vmatpush1.bf16.msra.mxu0 0
    %78 = vmatprep.subr.bf16.mxu0 0
    %79 = vmatpush1.bf16.msra.mxu0 0
    %80 = vmatprep.subr.bf16.mxu0 0
    %81 = vmatpush1.bf16.msra.mxu0 %v63
    %82 = vmatprep.subr.bf16.mxu0 0
    %83 = vmatpush1.bf16.msra.mxu0 %v62
    %84 = vmatprep.subr.bf16.mxu0 0
    %85 = vmatpush1.bf16.msra.mxu0 %v61
    %86 = vmatprep.subr.bf16.mxu0 0
    %87 = vmatpush1.bf16.msra.mxu0 %v60
    %88 = vmatprep.subr.bf16.mxu0 0
    %89 = vmatpush2.bf16.msra.mxu0 0
    %90 = vmatprep.subr.bf16.mxu0 0
    %91 = vmatpush2.bf16.msra.mxu0 0
    %92 = vmatprep.subr.bf16.mxu0 0
    %93 = vmatpush2.bf16.msra.mxu0 0
    %94 = vmatprep.subr.bf16.mxu0 0
    %95 = vmatpush2.bf16.msra.mxu0 0
    %96 = vmatprep.subr.bf16.mxu0 0
    %97 = vmatpush2.bf16.msra.mxu0 0
    %98 = vmatprep.subr.bf16.mxu0 0
    %99 = vmatpush2.bf16.msra.mxu0 0
    %100 = vmatprep.subr.bf16.mxu0 0
    %101 = vmatpush2.bf16.msra.mxu0 0
    %102 = vmatprep.subr.bf16.mxu0 0
    %103 = vmatpush2.bf16.msra.mxu0 0
    %104 = vmatprep.mubr.bf16.mxu0 0
    %105 = vmatmul.mubr.bf16.gmra.mxu0 %v70
    %v106 = vpop.f32.mrf.mxu0
    %v107 = vadd.f32 %v43, %v106
    %v108 = vpop.f32.mrf.mxu0
    %v109 = vpop.f32.mrf.mxu0
    %v110 = vpop.f32.mrf.mxu0
    %111 = vdwg.mxu0
    %v112 = vxor.u32 %v107, 2147483648
    %v113 = vmul.f32 %v112, 1.442695
    %v114 = vpow.pop %v113
    %v115 = vadd.f32 %v114, 1.0
    %v116 = vrcp.pop %v115
    %v117 = vmul.f32 1.0, %v116
    %v118 = vmul.f32 %v107, %v117
    %v119 = vpack.c.bf16 %v118, %v118
    %v120 = vld [vmem:[#allocation2 + $0x20] sm:$0xf]
    %v121 = vld [vmem:[#allocation2 + $0x24] sm:$0xf]
    %v122 = vld [vmem:[#allocation2 + $0x28] sm:$0xf]
    %v123 = vld [vmem:[#allocation2 + $0x2c] sm:$0xf]
    %v124 = vld [vmem:[#allocation2 + $0x30] sm:$0xf]
    %v125 = vld [vmem:[#allocation2 + $0x34] sm:$0xf]
    %v126 = vld [vmem:[#allocation2 + $0x38] sm:$0xf]
    %v127 = vld [vmem:[#allocation2 + $0x3c] sm:$0xf]
    %v128 = vld [vmem:[%s2 + $0x1] sm:$0x1]
    %v129 = vlaneseq
    %v130 = vshrl.u32 %v129, 7
    %v131 = vsub.s32 0, %v130
    %v132 = vrot.slane %v128, %v131
    %v141 = vunpack.c.l.b16 %v120
    %v142 = vunpack.c.l.b16 %v121
    %v143 = vunpack.c.l.b16 %v122
    %v144 = vunpack.c.l.b16 %v123
    %v145 = vunpack.c.l.b16 %v124
    %v146 = vunpack.c.l.b16 %v125
    %v147 = vunpack.c.l.b16 %v126
    %v148 = vunpack.c.l.b16 %v127
    %v149 = vpack.c.b16 %v142, %v141
    %v150 = vpack.c.b16 %v144, %v143
    %v151 = vpack.c.b16 %v146, %v145
    %v152 = vpack.c.b16 %v148, %v147
    %v158 = vsel %vm68, %v119, 0
    %160 = vmatprep.subr.bf16.mxu0 0
    %161 = vmatpush1.bf16.msra.mxu0 0
    %162 = vmatprep.subr.bf16.mxu0 0
    %163 = vmatpush1.bf16.msra.mxu0 0
    %164 = vmatprep.subr.bf16.mxu0 0
    %165 = vmatpush1.bf16.msra.mxu0 0
    %166 = vmatprep.subr.bf16.mxu0 0
    %167 = vmatpush1.bf16.msra.mxu0 0
    %168 = vmatprep.subr.bf16.mxu0 0
    %169 = vmatpush1.bf16.msra.mxu0 %v152
    %170 = vmatprep.subr.bf16.mxu0 0
    %171 = vmatpush1.bf16.msra.mxu0 %v151
    %172 = vmatprep.subr.bf16.mxu0 0
    %173 = vmatpush1.bf16.msra.mxu0 %v150
    %174 = vmatprep.subr.bf16.mxu0 0
    %175 = vmatpush1.bf16.msra.mxu0 %v149
    %176 = vmatprep.subr.bf16.mxu0 0
    %177 = vmatpush2.bf16.msra.mxu0 0
    %178 = vmatprep.subr.bf16.mxu0 0
    %179 = vmatpush2.bf16.msra.mxu0 0
    %180 = vmatprep.subr.bf16.mxu0 0
    %181 = vmatpush2.bf16.msra.mxu0 0
    %182 = vmatprep.subr.bf16.mxu0 0
    %183 = vmatpush2.bf16.msra.mxu0 0
    %184 = vmatprep.subr.bf16.mxu0 0
    %185 = vmatpush2.bf16.msra.mxu0 0
    %186 = vmatprep.subr.bf16.mxu0 0
    %187 = vmatpush2.bf16.msra.mxu0 0
    %188 = vmatprep.subr.bf16.mxu0 0
    %189 = vmatpush2.bf16.msra.mxu0 0
    %190 = vmatprep.subr.bf16.mxu0 0
    %191 = vmatpush2.bf16.msra.mxu0 0
    %192 = vmatprep.mubr.bf16.mxu0 0
    %193 = vmatmul.mubr.bf16.gmra.mxu0 %v158
    %v194 = vpop.f32.mrf.mxu0
    %v195 = vadd.f32 %v132, %v194
    %v196 = vpop.f32.mrf.mxu0
    %v197 = vpop.f32.mrf.mxu0
    %v198 = vpop.f32.mrf.mxu0
    %199 = vdwg.mxu0
    %v200 = vxor.u32 %v195, 2147483648
    %v201 = vmul.f32 %v200, 1.442695
    %v202 = vpow.pop %v201
    %v203 = vadd.f32 %v202, 1.0
    %v204 = vrcp.pop %v203
    %v205 = vmul.f32 1.0, %v204
    %v206 = vmul.f32 %v195, %v205
    %v207 = vpack.c.bf16 %v206, %v206
    %v208 = vld [vmem:[#allocation2 + $0x40] sm:$0xf]
    %v209 = vld [vmem:[#allocation2 + $0x44] sm:$0xf]
    %v210 = vld [vmem:[#allocation2 + $0x48] sm:$0xf]
    %v211 = vld [vmem:[#allocation2 + $0x4c] sm:$0xf]
    %v212 = vld [vmem:[#allocation2 + $0x50] sm:$0xf]
    %v213 = vld [vmem:[#allocation2 + $0x54] sm:$0xf]
    %v214 = vld [vmem:[#allocation2 + $0x58] sm:$0xf]
    %v215 = vld [vmem:[#allocation2 + $0x5c] sm:$0xf]
    %v216 = vld [vmem:[%s2 + $0x2] sm:$0x1]
    %v217 = vlaneseq
    %v218 = vshrl.u32 %v217, 7
    %v219 = vsub.s32 0, %v218
    %v220 = vrot.slane %v216, %v219
    %v229 = vunpack.c.l.b16 %v208
    %v230 = vunpack.c.l.b16 %v209
    %v231 = vunpack.c.l.b16 %v210
    %v232 = vunpack.c.l.b16 %v211
    %v233 = vunpack.c.l.b16 %v212
    %v234 = vunpack.c.l.b16 %v213
    %v235 = vunpack.c.l.b16 %v214
    %v236 = vunpack.c.l.b16 %v215
    %v237 = vpack.c.b16 %v230, %v229
    %v238 = vpack.c.b16 %v232, %v231
    %v239 = vpack.c.b16 %v234, %v233
    %v240 = vpack.c.b16 %v236, %v235
    %v246 = vsel %vm68, %v207, 0
    %248 = vmatprep.subr.bf16.mxu0 0
    %249 = vmatpush1.bf16.msra.mxu0 0
    %250 = vmatprep.subr.bf16.mxu0 0
    %251 = vmatpush1.bf16.msra.mxu0 0
    %252 = vmatprep.subr.bf16.mxu0 0
    %253 = vmatpush1.bf16.msra.mxu0 0
    %254 = vmatprep.subr.bf16.mxu0 0
    %255 = vmatpush1.bf16.msra.mxu0 0
    %256 = vmatprep.subr.bf16.mxu0 0
    %257 = vmatpush1.bf16.msra.mxu0 %v240
    %258 = vmatprep.subr.bf16.mxu0 0
    %259 = vmatpush1.bf16.msra.mxu0 %v239
    %260 = vmatprep.subr.bf16.mxu0 0
    %261 = vmatpush1.bf16.msra.mxu0 %v238
    %262 = vmatprep.subr.bf16.mxu0 0
    %263 = vmatpush1.bf16.msra.mxu0 %v237
    %264 = vmatprep.subr.bf16.mxu0 0
    %265 = vmatpush2.bf16.msra.mxu0 0
    %266 = vmatprep.subr.bf16.mxu0 0
    %267 = vmatpush2.bf16.msra.mxu0 0
    %268 = vmatprep.subr.bf16.mxu0 0
    %269 = vmatpush2.bf16.msra.mxu0 0
    %270 = vmatprep.subr.bf16.mxu0 0
    %271 = vmatpush2.bf16.msra.mxu0 0
    %272 = vmatprep.subr.bf16.mxu0 0
    %273 = vmatpush2.bf16.msra.mxu0 0
    %274 = vmatprep.subr.bf16.mxu0 0
    %275 = vmatpush2.bf16.msra.mxu0 0
    %276 = vmatprep.subr.bf16.mxu0 0
    %277 = vmatpush2.bf16.msra.mxu0 0
    %278 = vmatprep.subr.bf16.mxu0 0
    %279 = vmatpush2.bf16.msra.mxu0 0
    %280 = vmatprep.mubr.bf16.mxu0 0
    %281 = vmatmul.mubr.bf16.gmra.mxu0 %v246
    %v282 = vpop.f32.mrf.mxu0
    %v283 = vadd.f32 %v220, %v282
    %v284 = vpop.f32.mrf.mxu0
    %v285 = vpop.f32.mrf.mxu0
    %v286 = vpop.f32.mrf.mxu0
    %287 = vdwg.mxu0
    %v288 = vmul.f32 %v283, 0.5
    %v289 = vmul.f32 %v288, 1.442695
    %v290 = vpow.pop %v289
    %292 = vrot.lane.b32.xlu0 %v290, 56
    %v293 = vpop.permute.xlu0 %292
    %v295 = vmul.f32 %v29, %v293
    %v296 = vpack.c.bf16 %v295, %v295
    %v297 = vld [vmem:[#allocation2 + $0x60] sm:$0xf]
    %299 = vrot.lane.b32.xlu0 %v296, 64
    %v300 = vpop.permute.xlu0 %299
    %vm301 = vcmask 64512
    %v303 = vsel %vm301, %v300, 0
    %vm305 = vcmask 1043456
    %v307 = vsel %vm305, %v297, 0
    %309 = vmatprep.subr.bf16.mxu0 0
    %310 = vmatpush1.bf16.msra.mxu0 0
    %311 = vmatprep.subr.bf16.mxu0 0
    %312 = vmatpush1.bf16.msra.mxu0 0
    %313 = vmatprep.subr.bf16.mxu0 0
    %314 = vmatpush1.bf16.msra.mxu0 0
    %315 = vmatprep.subr.bf16.mxu0 0
    %316 = vmatpush1.bf16.msra.mxu0 0
    %317 = vmatprep.subr.bf16.mxu0 0
    %318 = vmatpush1.bf16.msra.mxu0 0
    %319 = vmatprep.subr.bf16.mxu0 0
    %320 = vmatpush1.bf16.msra.mxu0 0
    %321 = vmatprep.subr.bf16.mxu0 0
    %322 = vmatpush1.bf16.msra.mxu0 0
    %323 = vmatprep.subr.bf16.mxu0 0
    %324 = vmatpush1.bf16.msra.mxu0 %v307
    %325 = vmatprep.subr.bf16.mxu0 0
    %326 = vmatpush2.bf16.msra.mxu0 0
    %327 = vmatprep.subr.bf16.mxu0 0
    %328 = vmatpush2.bf16.msra.mxu0 0
    %329 = vmatprep.subr.bf16.mxu0 0
    %330 = vmatpush2.bf16.msra.mxu0 0
    %331 = vmatprep.subr.bf16.mxu0 0
    %332 = vmatpush2.bf16.msra.mxu0 0
    %333 = vmatprep.subr.bf16.mxu0 0
    %334 = vmatpush2.bf16.msra.mxu0 0
    %335 = vmatprep.subr.bf16.mxu0 0
    %336 = vmatpush2.bf16.msra.mxu0 0
    %337 = vmatprep.subr.bf16.mxu0 0
    %338 = vmatpush2.bf16.msra.mxu0 0
    %339 = vmatprep.subr.bf16.mxu0 0
    %340 = vmatpush2.bf16.msra.mxu0 0
    %341 = vmatprep.mubr.bf16.mxu0 0
    %342 = vmatmul.mubr.bf16.gmra.mxu0 %v303
    %v343 = vpop.f32.mrf.mxu0
    %v344 = vadd.f32 0.0, %v343
    %v345 = vpop.f32.mrf.mxu0
    %v346 = vpop.f32.mrf.mxu0
    %v347 = vpop.f32.mrf.mxu0
    %348 = vdwg.mxu0
    %350 = vrot.lane.b32.xlu0 %v344, 16
    %v351 = vpop.permute.xlu0 %350
    %v353 = vadd.f32 %v283, %v351
    %v354 = vxor.u32 %v353, 2147483648
    %v355 = vmul.f32 %v354, 1.442695
    %v356 = vpow.pop %v355
    %v357 = vadd.f32 %v356, 1.0
    %v358 = vrcp.pop %v357
    %v359 = vmul.f32 1.0, %v358
    %v360 = vmul.f32 %v353, %v359
    %v361 = vpack.c.bf16 %v360, %v360
    %v362 = vld [vmem:[#allocation2 + $0x68] sm:$0xf]
    %v363 = vld [vmem:[#allocation2 + $0x6c] sm:$0xf]
    %v364 = vld [vmem:[#allocation2 + $0x70] sm:$0xf]
    %v365 = vld [vmem:[#allocation2 + $0x74] sm:$0xf]
    %v366 = vld [vmem:[#allocation2 + $0x78] sm:$0xf]
    %v367 = vld [vmem:[#allocation2 + $0x7c] sm:$0xf]
    %v368 = vld [vmem:[#allocation2 + $0x80] sm:$0xf]
    %v369 = vld [vmem:[#allocation2 + $0x84] sm:$0xf]
    %v370 = vld [vmem:[%s2 + $0x3] sm:$0x1]
    %v371 = vlaneseq
    %v372 = vshrl.u32 %v371, 7
    %v373 = vsub.s32 0, %v372
    %v374 = vrot.slane %v370, %v373
    %376 = vrot.lane.b32.xlu0 %v361, 112
    %v377 = vpop.permute.xlu0 %376
    %v386 = vunpack.c.l.b16 %v362
    %v387 = vunpack.c.l.b16 %v363
    %v388 = vunpack.c.l.b16 %v364
    %v389 = vunpack.c.l.b16 %v365
    %v390 = vunpack.c.l.b16 %v366
    %v391 = vunpack.c.l.b16 %v367
    %v392 = vunpack.c.l.b16 %v368
    %v393 = vunpack.c.l.b16 %v369
    %v394 = vpack.c.b16 %v387, %v386
    %v395 = vpack.c.b16 %v389, %v388
    %v396 = vpack.c.b16 %v391, %v390
    %v397 = vpack.c.b16 %v393, %v392
    %v403 = vsel %vm68, %v377, 0
    %405 = vmatprep.subr.bf16.mxu0 0
    %406 = vmatpush1.bf16.msra.mxu0 0
    %407 = vmatprep.subr.bf16.mxu0 0
    %408 = vmatpush1.bf16.msra.mxu0 0
    %409 = vmatprep.subr.bf16.mxu0 0
    %410 = vmatpush1.bf16.msra.mxu0 0
    %411 = vmatprep.subr.bf16.mxu0 0
    %412 = vmatpush1.bf16.msra.mxu0 0
    %413 = vmatprep.subr.bf16.mxu0 0
    %414 = vmatpush1.bf16.msra.mxu0 %v397
    %415 = vmatprep.subr.bf16.mxu0 0
    %416 = vmatpush1.bf16.msra.mxu0 %v396
    %417 = vmatprep.subr.bf16.mxu0 0
    %418 = vmatpush1.bf16.msra.mxu0 %v395
    %419 = vmatprep.subr.bf16.mxu0 0
    %420 = vmatpush1.bf16.msra.mxu0 %v394
    %421 = vmatprep.subr.bf16.mxu0 0
    %422 = vmatpush2.bf16.msra.mxu0 0
    %423 = vmatprep.subr.bf16.mxu0 0
    %424 = vmatpush2.bf16.msra.mxu0 0
    %425 = vmatprep.subr.bf16.mxu0 0
    %426 = vmatpush2.bf16.msra.mxu0 0
    %427 = vmatprep.subr.bf16.mxu0 0
    %428 = vmatpush2.bf16.msra.mxu0 0
    %429 = vmatprep.subr.bf16.mxu0 0
    %430 = vmatpush2.bf16.msra.mxu0 0
    %431 = vmatprep.subr.bf16.mxu0 0
    %432 = vmatpush2.bf16.msra.mxu0 0
    %433 = vmatprep.subr.bf16.mxu0 0
    %434 = vmatpush2.bf16.msra.mxu0 0
    %435 = vmatprep.subr.bf16.mxu0 0
    %436 = vmatpush2.bf16.msra.mxu0 0
    %437 = vmatprep.mubr.bf16.mxu0 0
    %438 = vmatmul.mubr.bf16.gmra.mxu0 %v403
    %v439 = vpop.f32.mrf.mxu0
    %v440 = vadd.f32 %v374, %v439
    %v441 = vpop.f32.mrf.mxu0
    %v442 = vpop.f32.mrf.mxu0
    %v443 = vpop.f32.mrf.mxu0
    %444 = vdwg.mxu0
    %446 = vrot.lane.b32.xlu0 %v283, 64
    %v447 = vpop.permute.xlu0 %446
    %v449 = vsel %vm68, %v440, %v447
    %vm450 = vcmask 654336
    %v451 = vsel %vm450, %v449, 0.0
    %452 = vst [vmem:[%s3] sm:$0xff] %v451
    // Predicated region
    $region18: #{vae_forward.1} parent=1 // pred_check
      _
    $region19: #{vae_forward.1} parent=1 // pred_check_branch
      %454 = sbr.rel (0) target = $region21
    $region20: #{vae_forward.1} parent=1 // pred_region
      _
    $region21: #{vae_forward.1} parent=1 // pred_fallthru
      _
    // Predicated region
    $region22: #{vae_forward.1} parent=1 // pred_check
      _
    $region23: #{vae_forward.1} parent=1 // pred_check_branch
      %456 = sbr.rel (0) target = $region25
    $region24: #{vae_forward.1} parent=1 // pred_region
      _
    $region25: #{vae_forward.1} parent=1 // pred_fallthru
      _
    %457 = vsyncpa [#allocation3], 1

</llo_original>
